<compile_context>
chip_gen: v5e
topology: v5e:2x2
jax: 0.10.0
libtpu: 0.0.40
codegen_flags: <defaults>
</compile_context>

<pallas_src>
import jax
import jax.numpy as jnp
from jax import lax
from jax.experimental import pallas as pl
from jax.experimental.pallas import tpu as pltpu


def _cpc_kernel(pts_ref, ct_ref, r_ref, out12_ref, out21_ref):
    # Squeezed leading batch dim: views are already per-batch-element.
    p = pts_ref[...]          # (3, N)  point coords: coord on sublanes, N on lanes
    c = ct_ref[...]           # (M, 3)  centers: M on sublanes, coord on lanes
    r = r_ref[...]            # (M, 1)  radii column

    M = c.shape[0]
    N = p.shape[1]

    # Pairwise squared distances, (M, N), lane-dense in N (pure VPU, K=3 unrolled).
    d2 = jnp.zeros((M, N), jnp.float32)
    for k in range(3):                                   # static unroll over coords
        diff = c[:, k:k + 1] - p[k:k + 1, :]             # (M,1)-(1,N) -> (M,N)
        d2 = d2 + diff * diff
    # (sqrt deferred to the reduced vectors below; argmin on d2 == argmin on d)

    # ---- direction 12: point -> nearest sphere (reduce over M, i.e. sublanes) ----
    min_d2_12 = jnp.min(d2, axis=0, keepdims=True)                     # (1, N)
    m_iota = lax.broadcasted_iota(jnp.int32, (M, N), 0)                # sublane index
    eq = d2 == min_d2_12                                               # (M, N)
    # first-index argmin (matches torch.min tie-breaking)
    idx12 = jnp.min(jnp.where(eq, m_iota, M), axis=0, keepdims=True)   # (1, N)
    r_sel = jnp.sum(jnp.where(m_iota == idx12, r, 0.0),
                    axis=0, keepdims=True)                             # (1, N)
    p2p12 = jnp.sqrt(jnp.maximum(min_d2_12, 0.0))                      # (1, N)
    p2s12 = (p2p12 - r_sel) ** 2                                       # (1, N)

    # ---- direction 21: sphere -> nearest point (reduce over N, i.e. lanes) ----
    min_d2_21 = jnp.min(d2, axis=1, keepdims=True)                     # (M, 1)
    p2p21 = jnp.sqrt(jnp.maximum(min_d2_21, 0.0))                      # (M, 1)
    p2s21 = (p2p21 - r) ** 2                                           # (M, 1)

    # Packed outputs: (2, N) lane-dense and a tiny (M, 2).
    out12_ref[0:1, :] = p2p12
    out12_ref[1:2, :] = p2s12
    out21_ref[:, 0:1] = p2p21
    out21_ref[:, 1:2] = p2s21


def cpc_loss(points, centers, center_radii, alpha=(0.1, 0.1)):
    """points: (B,N,3), centers: (B,M,3), center_radii: (B,M,1)."""
    points = points.astype(jnp.float32)
    centers = centers.astype(jnp.float32)
    center_radii = center_radii.astype(jnp.float32)
    B, N, _ = points.shape
    _, M, _ = centers.shape

    pts_t = jnp.transpose(points, (0, 2, 1))              # (B, 3, N): N lane-dense

    out_shapes = (
        jax.ShapeDtypeStruct((B, 2, N), jnp.float32),      # rows: [p2p12, p2s12]
        jax.ShapeDtypeStruct((B, M, 2), jnp.float32),      # cols: [p2p21, p2s21]
    )

    grid_spec = pltpu.PrefetchScalarGridSpec(
        num_scalar_prefetch=0,
        grid=(B,),
        in_specs=[
            pl.BlockSpec((None, 3, N), lambda b: (b, 0, 0)),   # points^T
            pl.BlockSpec((None, M, 3), lambda b: (b, 0, 0)),   # centers
            pl.BlockSpec((None, M, 1), lambda b: (b, 0, 0)),   # radii
        ],
        out_specs=[
            pl.BlockSpec((None, 2, N), lambda b: (b, 0, 0)),
            pl.BlockSpec((None, M, 2), lambda b: (b, 0, 0)),
        ],
    )

    out12, out21 = pl.pallas_call(
        _cpc_kernel,
        out_shape=out_shapes,
        grid_spec=grid_spec,
        compiler_params=pltpu.CompilerParams(dimension_semantics=("parallel",)),
    )(pts_t, centers, center_radii)

    p2p12 = out12[:, 0, :]          # (B, N)
    p2s12 = out12[:, 1, :]          # (B, N)
    p2p21 = out21[:, :, 0]          # (B, M)
    p2s21 = out21[:, :, 1]          # (B, M)

    # torch.var default is unbiased -> ddof=1 (over all elements)
    var12 = jnp.var(p2p12, ddof=1)
    mean12 = jnp.mean(p2s12)
    var21 = jnp.var(p2p21, ddof=1)
    mean21 = jnp.mean(p2s21)
    return (alpha[0] * (var12 + var21), alpha[1] * (mean12 + mean21))


def cpc_loss_ref(points, centers, center_radii, alpha=(0.1, 0.1)):
    """Pure-JAX reference mirroring the PyTorch semantics."""
    d = jnp.sqrt(jnp.sum((points[:, :, None, :] - centers[:, None, :, :]) ** 2, -1))  # (B,N,M)
    r = center_radii[..., 0]                                                          # (B,M)
    p2p12 = jnp.min(d, axis=2)
    idx12 = jnp.argmin(d, axis=2)
    r12 = jnp.take_along_axis(r, idx12, axis=1)
    p2s12 = (p2p12 - r12) ** 2
    p2p21 = jnp.min(d, axis=1)
    p2s21 = (p2p21 - r) ** 2
    return (alpha[0] * (jnp.var(p2p12, ddof=1) + jnp.var(p2p21, ddof=1)),
            alpha[1] * (jnp.mean(p2s12) + jnp.mean(p2s21)))


if __name__ == "__main__":
    key = jax.random.PRNGKey(0)
    kp, kc, kr = jax.random.split(key, 3)

    B, N, M = 2, 128, 16
    points = jax.random.normal(kp, (B, N, 3), dtype=jnp.float32)
    centers = jax.random.normal(kc, (B, M, 3), dtype=jnp.float32)
    center_radii = jax.random.uniform(kr, (B, M, 1), dtype=jnp.float32,
                                      minval=0.05, maxval=0.3)

    out = cpc_loss(points, centers, center_radii, alpha=(0.1, 0.1))
    out = jax.block_until_ready(out)

    ref = cpc_loss_ref(points, centers, center_radii, alpha=(0.1, 0.1))
    assert jnp.allclose(out[0], ref[0], rtol=1e-4, atol=1e-5), (out[0], ref[0])
    assert jnp.allclose(out[1], ref[1], rtol=1e-4, atol=1e-5), (out[1], ref[1])

    print("KERNEL_OK")
</pallas_src>

<mosaic_0001>
module attributes {stable_mosaic.version = 11 : i64} {
  func.func @_cpc_kernel(%arg0: i32, %arg1: memref<1x3x128xf32, #tpu.memory_space<vmem>>, %arg2: memref<1x16x3xf32, #tpu.memory_space<vmem>>, %arg3: memref<1x16x1xf32, #tpu.memory_space<vmem>>, %arg4: memref<1x2x128xf32, #tpu.memory_space<vmem>>, %arg5: memref<1x16x2xf32, #tpu.memory_space<vmem>>) attributes {dimension_semantics = [#tpu.dimension_semantics<parallel>], iteration_bounds = array<i64: 2>, scalar_prefetch = 0 : i64, scratch_operands = 0 : i64, tpu.core_type = #tpu.core_type<tc>, window_params = [{transform_indices = @transform_0, window_bounds = array<i64: 1, 3, 128>}, {transform_indices = @transform_1, window_bounds = array<i64: 1, 16, 3>}, {transform_indices = @transform_2, window_bounds = array<i64: 1, 16, 1>}, {transform_indices = @transform_3, window_bounds = array<i64: 1, 2, 128>}, {transform_indices = @transform_4, window_bounds = array<i64: 1, 16, 2>}]} {
    %c0 = arith.constant 0 : index
    %c0_0 = arith.constant 0 : index
    %c0_1 = arith.constant 0 : index
    %0 = vector.load %arg1[%c0, %c0_0, %c0_1] : memref<1x3x128xf32, #tpu.memory_space<vmem>>, vector<1x3x128xf32>
    %1 = vector.shape_cast %0 : vector<1x3x128xf32> to vector<3x128xf32>
    %c0_2 = arith.constant 0 : index
    %c0_3 = arith.constant 0 : index
    %c0_4 = arith.constant 0 : index
    %2 = vector.load %arg2[%c0_2, %c0_3, %c0_4] : memref<1x16x3xf32, #tpu.memory_space<vmem>>, vector<1x16x3xf32>
    %3 = vector.shape_cast %2 : vector<1x16x3xf32> to vector<16x3xf32>
    %c0_5 = arith.constant 0 : index
    %c0_6 = arith.constant 0 : index
    %c0_7 = arith.constant 0 : index
    %4 = vector.load %arg3[%c0_5, %c0_6, %c0_7] : memref<1x16x1xf32, #tpu.memory_space<vmem>>, vector<1x16x1xf32>
    %5 = vector.shape_cast %4 : vector<1x16x1xf32> to vector<16x1xf32>
    %cst = arith.constant 0.000000e+00 : f32
    %6 = vector.broadcast %cst : f32 to vector<16x128xf32>
    %7 = vector.extract_strided_slice %3 {offsets = [0, 0], sizes = [16, 1], strides = [1, 1]} : vector<16x3xf32> to vector<16x1xf32>
    %8 = vector.extract_strided_slice %1 {offsets = [0, 0], sizes = [1, 128], strides = [1, 1]} : vector<3x128xf32> to vector<1x128xf32>
    %9 = vector.broadcast %7 : vector<16x1xf32> to vector<16x128xf32>
    %10 = vector.broadcast %8 : vector<1x128xf32> to vector<16x128xf32>
    %11 = arith.subf %9, %10 : vector<16x128xf32>
    %12 = arith.mulf %11, %11 : vector<16x128xf32>
    %13 = arith.addf %6, %12 : vector<16x128xf32>
    %14 = vector.extract_strided_slice %3 {offsets = [0, 1], sizes = [16, 1], strides = [1, 1]} : vector<16x3xf32> to vector<16x1xf32>
    %15 = vector.extract_strided_slice %1 {offsets = [1, 0], sizes = [1, 128], strides = [1, 1]} : vector<3x128xf32> to vector<1x128xf32>
    %16 = vector.broadcast %14 : vector<16x1xf32> to vector<16x128xf32>
    %17 = vector.broadcast %15 : vector<1x128xf32> to vector<16x128xf32>
    %18 = arith.subf %16, %17 : vector<16x128xf32>
    %19 = arith.mulf %18, %18 : vector<16x128xf32>
    %20 = arith.addf %13, %19 : vector<16x128xf32>
    %21 = vector.extract_strided_slice %3 {offsets = [0, 2], sizes = [16, 1], strides = [1, 1]} : vector<16x3xf32> to vector<16x1xf32>
    %22 = vector.extract_strided_slice %1 {offsets = [2, 0], sizes = [1, 128], strides = [1, 1]} : vector<3x128xf32> to vector<1x128xf32>
    %23 = vector.broadcast %21 : vector<16x1xf32> to vector<16x128xf32>
    %24 = vector.broadcast %22 : vector<1x128xf32> to vector<16x128xf32>
    %25 = arith.subf %23, %24 : vector<16x128xf32>
    %26 = arith.mulf %25, %25 : vector<16x128xf32>
    %27 = arith.addf %20, %26 : vector<16x128xf32>
    %cst_8 = arith.constant dense<0x7F800000> : vector<128xf32>
    %28 = vector.multi_reduction <minimumf>, %27, %cst_8 [0] : vector<16x128xf32> to vector<128xf32>
    %29 = vector.shape_cast %28 : vector<128xf32> to vector<1x128xf32>
    %30 = tpu.iota {dimensions = array<i32: 0>} : vector<16x128xi32>
    %31 = vector.broadcast %29 : vector<1x128xf32> to vector<16x128xf32>
    %32 = arith.cmpf oeq, %27, %31 : vector<16x128xf32>
    %c16_i32 = arith.constant 16 : i32
    %33 = vector.broadcast %c16_i32 : i32 to vector<16x128xi32>
    %34 = arith.select %32, %30, %33 : vector<16x128xi1>, vector<16x128xi32>
    %cst_9 = arith.constant dense<2147483647> : vector<128xi32>
    %35 = vector.multi_reduction <minsi>, %34, %cst_9 [0] : vector<16x128xi32> to vector<128xi32>
    %36 = vector.shape_cast %35 : vector<128xi32> to vector<1x128xi32>
    %37 = vector.broadcast %36 : vector<1x128xi32> to vector<16x128xi32>
    %38 = arith.cmpi eq, %30, %37 : vector<16x128xi32>
    %cst_10 = arith.constant 0.000000e+00 : f32
    %39 = vector.shape_cast %5 : vector<16x1xf32> to vector<16x1xf32>
    %40 = vector.broadcast %39 : vector<16x1xf32> to vector<16x128xf32>
    %41 = vector.broadcast %cst_10 : f32 to vector<16x128xf32>
    %42 = arith.select %38, %40, %41 : vector<16x128xi1>, vector<16x128xf32>
    %cst_11 = arith.constant dense<0.000000e+00> : vector<128xf32>
    %43 = vector.multi_reduction <add>, %42, %cst_11 [0] : vector<16x128xf32> to vector<128xf32>
    %44 = vector.shape_cast %43 : vector<128xf32> to vector<1x128xf32>
    %cst_12 = arith.constant 0.000000e+00 : f32
    %45 = vector.broadcast %cst_12 : f32 to vector<1x128xf32>
    %46 = arith.maximumf %29, %45 : vector<1x128xf32>
    %47 = math.sqrt %46 : vector<1x128xf32>
    %48 = arith.subf %47, %44 : vector<1x128xf32>
    %49 = arith.mulf %48, %48 : vector<1x128xf32>
    %cst_13 = arith.constant dense<0x7F800000> : vector<16xf32>
    %50 = vector.multi_reduction <minimumf>, %27, %cst_13 [1] : vector<16x128xf32> to vector<16xf32>
    %51 = vector.shape_cast %50 : vector<16xf32> to vector<16x1xf32>
    %cst_14 = arith.constant 0.000000e+00 : f32
    %52 = vector.broadcast %cst_14 : f32 to vector<16x1xf32>
    %53 = arith.maximumf %51, %52 : vector<16x1xf32>
    %54 = math.sqrt %53 : vector<16x1xf32>
    %55 = arith.subf %54, %5 : vector<16x1xf32>
    %56 = arith.mulf %55, %55 : vector<16x1xf32>
    %c0_15 = arith.constant 0 : index
    %c0_16 = arith.constant 0 : index
    %c0_17 = arith.constant 0 : index
    %57 = vector.load %arg4[%c0_15, %c0_16, %c0_17] : memref<1x2x128xf32, #tpu.memory_space<vmem>>, vector<1x1x128xf32>
    %58 = vector.shape_cast %57 : vector<1x1x128xf32> to vector<1x128xf32>
    %59 = vector.shape_cast %47 : vector<1x128xf32> to vector<1x1x128xf32>
    tpu.vector_store %arg4[%c0_15, %c0_16, %c0_17], %59 {strides = array<i32>} : memref<1x2x128xf32, #tpu.memory_space<vmem>>, vector<1x1x128xf32>,
    %c0_18 = arith.constant 0 : index
    %c1 = arith.constant 1 : index
    %c0_19 = arith.constant 0 : index
    %60 = vector.load %arg4[%c0_18, %c1, %c0_19] : memref<1x2x128xf32, #tpu.memory_space<vmem>>, vector<1x1x128xf32>
    %61 = vector.shape_cast %60 : vector<1x1x128xf32> to vector<1x128xf32>
    %62 = vector.shape_cast %49 : vector<1x128xf32> to vector<1x1x128xf32>
    tpu.vector_store %arg4[%c0_18, %c1, %c0_19], %62 {strides = array<i32>} : memref<1x2x128xf32, #tpu.memory_space<vmem>>, vector<1x1x128xf32>,
    %c0_20 = arith.constant 0 : index
    %c0_21 = arith.constant 0 : index
    %c0_22 = arith.constant 0 : index
    %63 = vector.load %arg5[%c0_20, %c0_21, %c0_22] : memref<1x16x2xf32, #tpu.memory_space<vmem>>, vector<1x16x1xf32>
    %64 = vector.shape_cast %63 : vector<1x16x1xf32> to vector<16x1xf32>
    %65 = vector.shape_cast %54 : vector<16x1xf32> to vector<1x16x1xf32>
    tpu.vector_store %arg5[%c0_20, %c0_21, %c0_22], %65 {strides = array<i32>} : memref<1x16x2xf32, #tpu.memory_space<vmem>>, vector<1x16x1xf32>,
    %c0_23 = arith.constant 0 : index
    %c0_24 = arith.constant 0 : index
    %c1_25 = arith.constant 1 : index
    %66 = vector.load %arg5[%c0_23, %c0_24, %c1_25] : memref<1x16x2xf32, #tpu.memory_space<vmem>>, vector<1x16x1xf32>
    %67 = vector.shape_cast %66 : vector<1x16x1xf32> to vector<16x1xf32>
    %68 = vector.shape_cast %56 : vector<16x1xf32> to vector<1x16x1xf32>
    tpu.vector_store %arg5[%c0_23, %c0_24, %c1_25], %68 {strides = array<i32>} : memref<1x16x2xf32, #tpu.memory_space<vmem>>, vector<1x16x1xf32>,
    return
  }
  func.func @transform_0(%arg0: i32) -> (i32, i32, i32) {
    %c0_i32 = arith.constant 0 : i32
    %c0_i32_0 = arith.constant 0 : i32
    %c0_i32_1 = arith.constant 0 : i32
    return %arg0, %c0_i32, %c0_i32_0 : i32, i32, i32
  }
  func.func @transform_1(%arg0: i32) -> (i32, i32, i32) {
    %c0_i32 = arith.constant 0 : i32
    %c0_i32_0 = arith.constant 0 : i32
    %c0_i32_1 = arith.constant 0 : i32
    return %arg0, %c0_i32, %c0_i32_0 : i32, i32, i32
  }
  func.func @transform_2(%arg0: i32) -> (i32, i32, i32) {
    %c0_i32 = arith.constant 0 : i32
    %c0_i32_0 = arith.constant 0 : i32
    %c0_i32_1 = arith.constant 0 : i32
    return %arg0, %c0_i32, %c0_i32_0 : i32, i32, i32
  }
  func.func @transform_3(%arg0: i32) -> (i32, i32, i32) {
    %c0_i32 = arith.constant 0 : i32
    %c0_i32_0 = arith.constant 0 : i32
    %c0_i32_1 = arith.constant 0 : i32
    return %arg0, %c0_i32, %c0_i32_0 : i32, i32, i32
  }
  func.func @transform_4(%arg0: i32) -> (i32, i32, i32) {
    %c0_i32 = arith.constant 0 : i32
    %c0_i32_0 = arith.constant 0 : i32
    %c0_i32_1 = arith.constant 0 : i32
    return %arg0, %c0_i32, %c0_i32_0 : i32, i32, i32
  }
}

</mosaic_0001>

<llo_original>
// kernel: tpu_custom_call.1
$region0: #{tpu_custom_call.1}
  #allocation0 [shape = 'u32[]', space=smem, size = 0x4, offset = 0x4, fixed_abs, tag = 'smem constant byte address 0x4 - core index']
  #allocation1 [shape = 'u32[72,128]{1,0:T(1,128)}', space=vmem, size = 0x9000, scoped, tag = 'internal scratch']
  %s0 = inlined_call_operand.vmem [shape: f32[2,3,128], index: 0, kind: input, shape index: {}]
  %s1 = inlined_call_operand.vmem [shape: f32[2,16,3], index: 1, kind: input, shape index: {}]
  %s2 = inlined_call_operand.vmem [shape: f32[2,16,1], index: 2, kind: input, shape index: {}]
  %s3 = inlined_call_operand.hbm [shape: f32[2,2,128], index: 3, kind: output, shape index: {0}]
  %s4 = inlined_call_operand.vmem [shape: f32[2,16,2], index: 4, kind: output, shape index: {1}]
  %5 = xla_tuple %s3, %s4
  %s6 = sld [smem:[#allocation0]]
  $region53: #{tpu_custom_call.1} parent=0
    _
  %s8 = ssub.s32 1, %s6
  %s9 = scalar_select 0, %s8, %s6
  $region1: #{tpu_custom_call.1} parent=0
    #allocation2 [shape = 'u8[2048]{0}', space=vmem, size = 0x800, scoped, tag = 'output window, operand 0']
    #allocation3 [shape = 's32[2]{0}', space=sflag, size = 0x8, scoped, tag = 'scoped memory for tpu_custom_call.1']
    %10 = vsyncpa [#allocation3], 0
    %s11 = scalar_lea.sflag [#allocation3], 1
    %12 = vsyncpa %s11, 0
    loop: start=0, step=1, limit=4
    $region2: #{tpu_custom_call.1} parent=1 // loop_pre_header
      _
    $region3: #{tpu_custom_call.1} parent=1 // loop_header
      %s14 = sphi 0, %s18
      %p15 = scmp.ge.s32.totalorder %s14, 4
      %s24 = sphi 0, %s26
      %s27 = sphi 0, %s24
      %s28 = sphi 0, %s27
      %s44 = sphi 0, %s28
      %s50 = sphi 0, %s52
      %s53 = sphi 0, %s50
      %s54 = sphi 0, %s53
      %s70 = sphi 0, %s54
      %s76 = sphi 0, %s78
      %s79 = sphi 0, %s76
      %s80 = sphi 0, %s79
      %s96 = sphi 0, %s80
      %s102 = sphi 0, %s104
      %s105 = sphi 0, %s102
      %s106 = sphi 0, %s105
      %s122 = sphi 0, %s106
      %s128 = sphi 0, %s130
      %s131 = sphi 0, %s128
      %s132 = sphi 0, %s131
      %s148 = sphi 0, %s132
    $region4: #{tpu_custom_call.1} parent=1 // loop_header_branch
      %17 = sbr.rel (%p15) target = $region8
    $region5: #{tpu_custom_call.1} parent=1 // loop_body
      %s19 = ssub.s32 %s14, 1
      %s20 = ssub.s32 %s14, 2
      %s21 = sadd.s32 %s14, 1
      %s22 = ssub.s32 %s14, %s21
      %p23 = scmp.eq.s32.totalorder %s22, 0
      %s25 = sadd.s32 %s24, 1
      %s26 = scalar_select %p23, %s24, %s25
      %p29 = pneg %p23
      %p30 = scmp.eq.s32.totalorder %s14, 1
      %p31 = por %p29, %p30
      %p32 = scmp.ne.s32.totalorder %s24, %s27
      %p33 = scmp.eq.s32.totalorder %s14, 0
      %p34 = por %p32, %p33
      %p35 = scmp.ne.s32.totalorder %s24, %s27
      %p36 = scmp.eq.s32.totalorder %s19, 1
      %p37 = por %p35, %p36
      %p38 = scmp.ne.s32.totalorder %s27, %s28
      %p39 = scmp.eq.s32.totalorder %s19, 0
      %p40 = por %p38, %p39
      %p41 = scmp.ne.s32.totalorder %s27, %s28
      %p42 = scmp.eq.s32.totalorder %s20, 1
      %p43 = por %p41, %p42
      %p45 = scmp.ne.s32.totalorder %s28, %s44
      %p46 = scmp.eq.s32.totalorder %s20, 0
      %p47 = por %p45, %p46
      %s48 = ssub.s32 %s14, %s21
      %p49 = scmp.eq.s32.totalorder %s48, 0
      %s51 = sadd.s32 %s50, 1
      %s52 = scalar_select %p49, %s50, %s51
      %p55 = pneg %p49
      %p56 = scmp.eq.s32.totalorder %s14, 1
      %p57 = por %p55, %p56
      %p58 = scmp.ne.s32.totalorder %s50, %s53
      %p59 = scmp.eq.s32.totalorder %s14, 0
      %p60 = por %p58, %p59
      %p61 = scmp.ne.s32.totalorder %s50, %s53
      %p62 = scmp.eq.s32.totalorder %s19, 1
      %p63 = por %p61, %p62
      %p64 = scmp.ne.s32.totalorder %s53, %s54
      %p65 = scmp.eq.s32.totalorder %s19, 0
      %p66 = por %p64, %p65
      %p67 = scmp.ne.s32.totalorder %s53, %s54
      %p68 = scmp.eq.s32.totalorder %s20, 1
      %p69 = por %p67, %p68
      %p71 = scmp.ne.s32.totalorder %s54, %s70
      %p72 = scmp.eq.s32.totalorder %s20, 0
      %p73 = por %p71, %p72
      %s74 = ssub.s32 %s14, %s21
      %p75 = scmp.eq.s32.totalorder %s74, 0
      %s77 = sadd.s32 %s76, 1
      %s78 = scalar_select %p75, %s76, %s77
      %p81 = pneg %p75
      %p82 = scmp.eq.s32.totalorder %s14, 1
      %p83 = por %p81, %p82
      %p84 = scmp.ne.s32.totalorder %s76, %s79
      %p85 = scmp.eq.s32.totalorder %s14, 0
      %p86 = por %p84, %p85
      %p87 = scmp.ne.s32.totalorder %s76, %s79
      %p88 = scmp.eq.s32.totalorder %s19, 1
      %p89 = por %p87, %p88
      %p90 = scmp.ne.s32.totalorder %s79, %s80
      %p91 = scmp.eq.s32.totalorder %s19, 0
      %p92 = por %p90, %p91
      %p93 = scmp.ne.s32.totalorder %s79, %s80
      %p94 = scmp.eq.s32.totalorder %s20, 1
      %p95 = por %p93, %p94
      %p97 = scmp.ne.s32.totalorder %s80, %s96
      %p98 = scmp.eq.s32.totalorder %s20, 0
      %p99 = por %p97, %p98
      %s100 = ssub.s32 %s14, %s21
      %p101 = scmp.eq.s32.totalorder %s100, 0
      %s103 = sadd.s32 %s102, 1
      %s104 = scalar_select %p101, %s102, %s103
      %p107 = pneg %p101
      %p108 = scmp.eq.s32.totalorder %s14, 1
      %p109 = por %p107, %p108
      %p110 = scmp.ne.s32.totalorder %s102, %s105
      %p111 = scmp.eq.s32.totalorder %s14, 0
      %p112 = por %p110, %p111
      %p113 = scmp.ne.s32.totalorder %s102, %s105
      %p114 = scmp.eq.s32.totalorder %s19, 1
      %p115 = por %p113, %p114
      %p116 = scmp.ne.s32.totalorder %s105, %s106
      %p117 = scmp.eq.s32.totalorder %s19, 0
      %p118 = por %p116, %p117
      %p119 = scmp.ne.s32.totalorder %s105, %s106
      %p120 = scmp.eq.s32.totalorder %s20, 1
      %p121 = por %p119, %p120
      %p123 = scmp.ne.s32.totalorder %s106, %s122
      %p124 = scmp.eq.s32.totalorder %s20, 0
      %p125 = por %p123, %p124
      %s126 = ssub.s32 %s14, %s21
      %p127 = scmp.eq.s32.totalorder %s126, 0
      %s129 = sadd.s32 %s128, 1
      %s130 = scalar_select %p127, %s128, %s129
      %p133 = pneg %p127
      %p134 = scmp.eq.s32.totalorder %s14, 1
      %p135 = por %p133, %p134
      %p136 = scmp.ne.s32.totalorder %s128, %s131
      %p137 = scmp.eq.s32.totalorder %s14, 0
      %p138 = por %p136, %p137
      %p139 = scmp.ne.s32.totalorder %s128, %s131
      %p140 = scmp.eq.s32.totalorder %s19, 1
      %p141 = por %p139, %p140
      %p142 = scmp.ne.s32.totalorder %s131, %s132
      %p143 = scmp.eq.s32.totalorder %s19, 0
      %p144 = por %p142, %p143
      %p145 = scmp.ne.s32.totalorder %s131, %s132
      %p146 = scmp.eq.s32.totalorder %s20, 1
      %p147 = por %p145, %p146
      %p149 = scmp.ne.s32.totalorder %s132, %s148
      %p150 = scmp.eq.s32.totalorder %s20, 0
      %p151 = por %p149, %p150
      %p152 = scmp.le.s32.totalorder 1, %s14
      %p153 = scmp.lt.s32.totalorder %s14, 3
      %p154 = pnand %p152, %p153
      %p155 = pneg %p154
      // Predicated region
      $region9: #{tpu_custom_call.1} parent=5 // pred_check
        _
      $region10: #{tpu_custom_call.1} parent=5 // pred_check_branch
        %157 = sbr.rel (%p154) target = $region12
      $region11: #{tpu_custom_call.1} parent=5 // pred_region
        %s158 = ssub.s32 %s14, 1
      $region12: #{tpu_custom_call.1} parent=5 // pred_fallthru
        _
      %p159 = scmp.lt.s32.totalorder %s14, 2
      // Predicated region
      $region13: #{tpu_custom_call.1} parent=5 // pred_check
        %p160 = pneg %p159
      $region14: #{tpu_custom_call.1} parent=5 // pred_check_branch
        %162 = sbr.rel (%p160) target = $region16
      $region15: #{tpu_custom_call.1} parent=5 // pred_region
        // Predicated region
        $region17: #{tpu_custom_call.1} parent=15 // pred_check
          %p163 = pneg %p34
        $region18: #{tpu_custom_call.1} parent=15 // pred_check_branch
          %165 = sbr.rel (%p163) target = $region20
        $region19: #{tpu_custom_call.1} parent=15 // pred_region
          %p166 = scmp.lt.s32.totalorder %s14, 1
          %s167 = scalar_select %p166, %s14, 1
          %s168 = smul.addr %s167, 4
          %s169 = scalar_lea.vmem %s0, %s168
        $region20: #{tpu_custom_call.1} parent=15 // pred_fallthru
          _
        // Predicated region
        $region21: #{tpu_custom_call.1} parent=15 // pred_check
          %p170 = pneg %p60
        $region22: #{tpu_custom_call.1} parent=15 // pred_check_branch
          %172 = sbr.rel (%p170) target = $region24
        $region23: #{tpu_custom_call.1} parent=15 // pred_region
          %p173 = scmp.lt.s32.totalorder %s14, 1
          %s174 = scalar_select %p173, %s14, 1
          %s175 = smul.addr %s174, 2
          %s176 = smul.addr %s175, 8
          %s177 = scalar_lea.vmem %s1, %s176
        $region24: #{tpu_custom_call.1} parent=15 // pred_fallthru
          _
        // Predicated region
        $region25: #{tpu_custom_call.1} parent=15 // pred_check
          %p178 = pneg %p86
        $region26: #{tpu_custom_call.1} parent=15 // pred_check_branch
          %180 = sbr.rel (%p178) target = $region28
        $region27: #{tpu_custom_call.1} parent=15 // pred_region
          %p181 = scmp.lt.s32.totalorder %s14, 1
          %s182 = scalar_select %p181, %s14, 1
          %s183 = smul.addr %s182, 2
          %s184 = smul.addr %s183, 8
          %s185 = scalar_lea.vmem %s2, %s184
        $region28: #{tpu_custom_call.1} parent=15 // pred_fallthru
          _
      $region16: #{tpu_custom_call.1} parent=5 // pred_fallthru
        _
      %p186 = scmp.le.s32.totalorder 1, %s14
      %p187 = scmp.lt.s32.totalorder %s14, 3
      %p188 = pnand %p186, %p187
      %p189 = pneg %p188
      // Predicated region
      $region29: #{tpu_custom_call.1} parent=5 // pred_check
        _
      $region30: #{tpu_custom_call.1} parent=5 // pred_check_branch
        %191 = sbr.rel (%p188) target = $region32
      $region31: #{tpu_custom_call.1} parent=5 // pred_region
        %s192 = ssub.s32 %s14, 1
        %p193 = scmp.lt.s32.totalorder %s19, 1
        %s194 = scalar_select %p193, %s19, 1
        %s195 = smul.addr %s194, 4
        %s196 = scalar_lea.vmem %s0, %s195
        %p197 = pneg %p40
        %p198 = pneg %p37
        %p199 = scmp.lt.s32.totalorder %s19, 1
        %s200 = scalar_select %p199, %s19, 1
        %s201 = smul.addr %s200, 2
        %s202 = smul.addr %s201, 8
        %s203 = scalar_lea.vmem %s1, %s202
        %p204 = pneg %p66
        %p205 = pneg %p63
        %p206 = scmp.lt.s32.totalorder %s19, 1
        %s207 = scalar_select %p206, %s19, 1
        %s208 = smul.addr %s207, 2
        %s209 = smul.addr %s208, 8
        %s210 = scalar_lea.vmem %s2, %s209
        %p211 = pneg %p92
        %p212 = pneg %p89
        %p213 = pneg %p118
        %p214 = pneg %p115
        %s215 = sand.u32 %s105, 1
        %s216 = scalar_lea.sflag [#allocation3], %s215
        %s217 = sand.u32 %s105, 1
        %s218 = smul.addr %s217, 2
        %s219 = scalar_lea.vmem [#allocation2], %s218
        %p220 = pneg %p144
        %p221 = pneg %p141
        %p222 = scmp.lt.s32.totalorder %s19, 1
        %s223 = scalar_select %p222, %s19, 1
        %s224 = smul.addr %s223, 2
        %s225 = smul.addr %s224, 8
        %s226 = scalar_lea.vmem %s4, %s225
        %p227 = scmp.lt.s32.totalorder %s19, 1
        %s228 = scalar_select %p227, %s19, 1
        %s229 = smul.addr %s228, 4
        %s230 = scalar_lea.vmem %s0, %s229
        %p231 = scmp.lt.s32.totalorder %s19, 1
        %s232 = scalar_select %p231, %s19, 1
        %s233 = smul.addr %s232, 2
        %s234 = smul.addr %s233, 8
        %s235 = scalar_lea.vmem %s1, %s234
        %p236 = scmp.lt.s32.totalorder %s19, 1
        %s237 = scalar_select %p236, %s19, 1
        %s238 = smul.addr %s237, 2
        %s239 = smul.addr %s238, 8
        %s240 = scalar_lea.vmem %s2, %s239
        %p241 = scmp.lt.s32.totalorder %s19, 1
        %s242 = scalar_select %p241, %s19, 1
        %s243 = smul.addr %s242, 2
        %s244 = smul.addr %s243, 8
        %s245 = scalar_lea.vmem %s4, %s244
        %v246 = vld [vmem:[%s230] sm:$0x7]
        %v247 = vld [vmem:[%s235] sm:$0xff]
        %v248 = vld [vmem:[%s235 + $0x8] sm:$0xff]
        %v249 = vld [vmem:[%s240] sm:$0xff]
        %v250 = vld [vmem:[%s240 + $0x8] sm:$0xff]
        %252 = vset.pattern.permute.xlu0 0
        %253 = vperm.xlu0 %252, %v247
        %v254 = vpop.permute.xlu0 %253
        %257 = vset.pattern.permute.xlu0 0
        %258 = vperm.xlu0 %257, %v248
        %v259 = vpop.permute.xlu0 %258
        %v261 = vperm.slane %v246, 0
        %v262 = vsub.f32 %v254, %v261
        %v263 = vsub.f32 %v259, %v261
        %v264 = vmul.f32 %v262, %v262
        %v265 = vmul.f32 %v263, %v263
        %v266 = vadd.f32 %v264, 0.0
        %v267 = vadd.f32 %v265, 0.0
        %268 = vset.pattern.permute.xlu0 1
        %269 = vperm.xlu0 %268, %v247
        %v270 = vpop.permute.xlu0 %269
        %272 = vset.pattern.permute.xlu0 1
        %273 = vperm.xlu0 %272, %v248
        %v274 = vpop.permute.xlu0 %273
        %v276 = vperm.slane %v246, 1
        %v277 = vsub.f32 %v270, %v276
        %v278 = vsub.f32 %v274, %v276
        %v279 = vmul.f32 %v277, %v277
        %v280 = vmul.f32 %v278, %v278
        %v281 = vadd.f32 %v266, %v279
        %v282 = vadd.f32 %v267, %v280
        %283 = vset.pattern.permute.xlu0 2
        %284 = vperm.xlu0 %283, %v247
        %v285 = vpop.permute.xlu0 %284
        %287 = vset.pattern.permute.xlu0 2
        %288 = vperm.xlu0 %287, %v248
        %v289 = vpop.permute.xlu0 %288
        %v291 = vperm.slane %v246, 2
        %v292 = vsub.f32 %v285, %v291
        %v293 = vsub.f32 %v289, %v291
        %v294 = vmul.f32 %v292, %v292
        %v295 = vmul.f32 %v293, %v293
        %v296 = vadd.f32 %v281, %v294
        %v297 = vadd.f32 %v282, %v295
        %v298 = vmin.f32 %v296, %v297
        %v299 = vrot.slane %v298, 4
        %v300 = vmin.f32 %v298, %v299
        %v301 = vrot.slane %v300, 2
        %v302 = vmin.f32 %v300, %v301
        %v303 = vrot.slane %v302, 1
        %v304 = vmin.f32 %v302, %v303
        %v305 = vlaneseq
        %v306 = vshrl.u32 %v305, 7
        %v307 = vadd.s32 %v306, 8
        %vm308 = vcmp.eq.f32.partialorder %v296, %v304
        %vm309 = vcmp.eq.f32.partialorder %v297, %v304
        %v310 = vsel %vm308, %v306, 16
        %v311 = vsel %vm309, %v307, 16
        %vm312 = vcmp.lt.s32.totalorder %v310, %v311
        %v313 = vsel %vm312, %v310, %v311
        %v314 = vrot.slane %v313, 4
        %vm315 = vcmp.lt.s32.totalorder %v313, %v314
        %v316 = vsel %vm315, %v313, %v314
        %v317 = vrot.slane %v316, 2
        %vm318 = vcmp.lt.s32.totalorder %v316, %v317
        %v319 = vsel %vm318, %v316, %v317
        %v320 = vrot.slane %v319, 1
        %vm321 = vcmp.lt.s32.totalorder %v319, %v320
        %v322 = vsel %vm321, %v319, %v320
        %vm323 = vcmp.eq.s32.totalorder %v306, %v322
        %vm324 = vcmp.eq.s32.totalorder %v307, %v322
        %326 = vset.pattern.permute.xlu0 0
        %327 = vperm.xlu0 %326, %v249
        %v328 = vpop.permute.xlu0 %327
        %331 = vset.pattern.permute.xlu0 0
        %332 = vperm.xlu0 %331, %v250
        %v333 = vpop.permute.xlu0 %332
        %v335 = vsel %vm323, %v328, 0.0
        %v336 = vsel %vm324, %v333, 0.0
        %v337 = vadd.f32 %v335, %v336
        %v338 = vrot.slane %v337, 4
        %v339 = vadd.f32 %v337, %v338
        %v340 = vrot.slane %v339, 2
        %v341 = vadd.f32 %v339, %v340
        %v342 = vrot.slane %v341, 1
        %v343 = vadd.f32 %v341, %v342
        %v344 = vmax.f32 %v304, 0.0
        %v345 = vrsqrt.pop %v344
        %v346 = vmul.f32 %v345, %v344
        %v347 = vmul.f32 %v346, %v345
        %v348 = vmul.f32 0.5, %v347
        %v349 = vsub.f32 1.5, %v348
        %v350 = vmul.f32 %v345, %v349
        %v351 = vmul.f32 %v344, %v350
        %vm352 = vcmp.eq.f32.partialorder %v344, inf
        %v353 = vsel %vm352, %v344, %v351
        %vm354 = vcmp.eq.f32.partialorder %v344, 0.0
        %v355 = vand.u32 %v344, 2147483648
        %v356 = vsel %vm354, %v355, %v353
        %v357 = vsub.f32 %v356, %v343
        %v358 = vmul.f32 %v357, %v357
        %359 = vmin.xlane.f32.xlu0 %v296
        %v360 = vpop.xlane.xlu0 %359
        %361 = vmin.xlane.f32.xlu0 %v297
        %v362 = vpop.xlane.xlu0 %361
        %v363 = vmax.f32 %v360, 0.0
        %v364 = vmax.f32 %v362, 0.0
        %v365 = vrsqrt.pop %v363
        %v366 = vmul.f32 %v365, %v363
        %v367 = vmul.f32 %v366, %v365
        %v368 = vmul.f32 0.5, %v367
        %v369 = vsub.f32 1.5, %v368
        %v370 = vmul.f32 %v365, %v369
        %v371 = vmul.f32 %v363, %v370
        %vm372 = vcmp.eq.f32.partialorder %v363, inf
        %v373 = vsel %vm372, %v363, %v371
        %vm374 = vcmp.eq.f32.partialorder %v363, 0.0
        %v375 = vand.u32 %v363, 2147483648
        %v376 = vsel %vm374, %v375, %v373
        %v377 = vrsqrt.pop %v364
        %v378 = vmul.f32 %v377, %v364
        %v379 = vmul.f32 %v378, %v377
        %v380 = vmul.f32 0.5, %v379
        %v381 = vsub.f32 1.5, %v380
        %v382 = vmul.f32 %v377, %v381
        %v383 = vmul.f32 %v364, %v382
        %vm384 = vcmp.eq.f32.partialorder %v364, inf
        %v385 = vsel %vm384, %v364, %v383
        %vm386 = vcmp.eq.f32.partialorder %v364, 0.0
        %v387 = vand.u32 %v364, 2147483648
        %v388 = vsel %vm386, %v387, %v385
        %v389 = vsub.f32 %v376, %v249
        %v390 = vsub.f32 %v388, %v250
        %v391 = vmul.f32 %v389, %v389
        %v392 = vmul.f32 %v390, %v390
        %393 = vst [vmem:[%s219] sm:$0x1] %v356
        %394 = vst [vmem:[%s219 + $0x1] sm:$0x1] %v358
        %vm395 = vcmask 7168
        %396 = vst.msk [vmem:[%s245] sm:$0xff] %vm395, %v376
        %397 = vst.msk [vmem:[%s245 + $0x8] sm:$0xff] %vm395, %v388
        %400 = vrot.lane.b32.xlu0 %v391, 1
        %v401 = vpop.permute.xlu0 %400
        %402 = vrot.lane.b32.xlu0 %v392, 1
        %v403 = vpop.permute.xlu0 %402
        %vm406 = vcmask 15368
        %407 = vst.msk [vmem:[%s245] sm:$0xff] %vm406, %v401
        %408 = vst.msk [vmem:[%s245 + $0x8] sm:$0xff] %vm406, %v403
        %s409 = sand.u32 %s105, 1
        %s410 = scalar_lea.sflag [#allocation3], %s409
        %s411 = sand.u32 %s105, 1
        %s412 = smul.addr %s411, 2
        %s413 = scalar_lea.vmem [#allocation2], %s412
        %p414 = scmp.lt.s32.totalorder %s19, 1
        %s415 = scalar_select %p414, %s19, 1
        %s416 = smul.addr %s415, 2
        %s417 = smul.addr %s416, 8
        %s418 = scalar_lea.vmem %s4, %s417
        // Predicated region
        $region33: #{tpu_custom_call.1} parent=31 // pred_check
          %p419 = pneg %p115
        $region34: #{tpu_custom_call.1} parent=31 // pred_check_branch
          %421 = sbr.rel (%p419) target = $region36
        $region35: #{tpu_custom_call.1} parent=31 // pred_region
          %423 = vsyncadd %s410, 0
          %s424 = smul.addr %s19, 2
          %s425 = scalar_lea.hbm %s3, %s424
          %s427 = sshll.u32 %s413, 4
          %s428 = int_to_ptr.vmem [resolvable:$true] %s427
          %s429 = sshll.u32 %s425, 4
          %s430 = int_to_ptr.hbm [resolvable:$true] %s429
          %432 = dma.vmem_to_hbm [thread:$0]  %s428, 32, %s430, %s410
        $region36: #{tpu_custom_call.1} parent=31 // pred_fallthru
          _
        // Predicated region
        $region37: #{tpu_custom_call.1} parent=31 // pred_check
          %p433 = pneg %p141
        $region38: #{tpu_custom_call.1} parent=31 // pred_check_branch
          %435 = sbr.rel (%p433) target = $region40
        $region39: #{tpu_custom_call.1} parent=31 // pred_region
          _
        $region40: #{tpu_custom_call.1} parent=31 // pred_fallthru
          _
      $region32: #{tpu_custom_call.1} parent=5 // pred_fallthru
        _
      %p436 = scmp.le.s32.totalorder 2, %s14
      // Predicated region
      $region41: #{tpu_custom_call.1} parent=5 // pred_check
        %p437 = pneg %p436
      $region42: #{tpu_custom_call.1} parent=5 // pred_check_branch
        %439 = sbr.rel (%p437) target = $region44
      $region43: #{tpu_custom_call.1} parent=5 // pred_region
        %s440 = ssub.s32 %s14, 2
        // Predicated region
        $region45: #{tpu_custom_call.1} parent=43 // pred_check
          %p441 = pneg %p121
        $region46: #{tpu_custom_call.1} parent=43 // pred_check_branch
          %443 = sbr.rel (%p441) target = $region48
        $region47: #{tpu_custom_call.1} parent=43 // pred_region
          %s444 = sand.u32 %s106, 1
          %s445 = scalar_lea.sflag [#allocation3], %s444
          %s446 = sand.u32 %s106, 1
          %s447 = smul.addr %s446, 2
          %s448 = scalar_lea.vmem [#allocation2], %s447
          %450 = dma.done %s445, 32
        $region48: #{tpu_custom_call.1} parent=43 // pred_fallthru
          _
        // Predicated region
        $region49: #{tpu_custom_call.1} parent=43 // pred_check
          %p451 = pneg %p147
        $region50: #{tpu_custom_call.1} parent=43 // pred_check_branch
          %453 = sbr.rel (%p451) target = $region52
        $region51: #{tpu_custom_call.1} parent=43 // pred_region
          %p454 = scmp.lt.s32.totalorder %s20, 1
          %s455 = scalar_select %p454, %s20, 1
          %s456 = smul.addr %s455, 2
          %s457 = smul.addr %s456, 8
          %s458 = scalar_lea.vmem %s4, %s457
        $region52: #{tpu_custom_call.1} parent=43 // pred_fallthru
          _
      $region44: #{tpu_custom_call.1} parent=5 // pred_fallthru
        _
    $region6: #{tpu_custom_call.1} parent=1 // loop_footer
      %s18 = sadd.s32 1, %s14
    $region7: #{tpu_custom_call.1} parent=1 // loop_footer_branch
      %13 = sbr.rel target = $region3
    $region8: #{tpu_custom_call.1} parent=1 // loop_exit
      _
    %459 = vsyncpa [#allocation3], 1
    %s460 = scalar_lea.sflag [#allocation3], 1
    %461 = vsyncpa %s460, 1

</llo_original>
